<compile_context>
chip_gen: v7x
topology: tpu7x:2x2x1
jax: 0.10.0
libtpu: 0.0.40
codegen_flags: <defaults>
</compile_context>

<pallas_src>
import functools

import jax
import jax.numpy as jnp
from jax.experimental import pallas as pl
from jax.experimental.pallas import tpu as pltpu


def _round_up(x, m):
    return ((x + m - 1) // m) * m


def _gather_rows_kernel(ids_ref, table_hbm, out_ref, sem):
    """Copy table_hbm[ids[step*TM + r]] -> out_ref[r] for r in [0, TM) via DMA."""
    step = pl.program_id(0)
    tm = out_ref.shape[0]
    base = step * tm
    copies = []
    for r in range(tm):                          # TM is small & static -> unrolled
        row = ids_ref[base + r]                  # SMEM scalar read (prefetched ids)
        cp = pltpu.make_async_copy(table_hbm.at[row], out_ref.at[r], sem)
        cp.start()
        copies.append(cp)
    for cp in copies:                            # issue all, then wait (overlap)
        cp.wait()


@functools.partial(jax.jit, static_argnames=("tile_rows",))
def _gather_rows(ids_padded, pe_weight, *, tile_rows):
    seq_padded = ids_padded.shape[0]
    _, dim = pe_weight.shape
    itemsize = jnp.dtype(pe_weight.dtype).itemsize
    return pl.pallas_call(
        _gather_rows_kernel,
        out_shape=jax.ShapeDtypeStruct((seq_padded, dim), pe_weight.dtype),
        grid_spec=pltpu.PrefetchScalarGridSpec(
            num_scalar_prefetch=1,                         # ids -> SMEM
            grid=(seq_padded // tile_rows,),
            in_specs=[pl.BlockSpec(memory_space=pl.ANY)],  # table stays in HBM
            out_specs=pl.BlockSpec((tile_rows, dim), lambda i, ids: (i, 0)),
            scratch_shapes=[pltpu.SemaphoreType.DMA],      # one shared DMA sem
        ),
        compiler_params=pltpu.CompilerParams(
            dimension_semantics=("parallel",)),
        cost_estimate=pl.CostEstimate(
            flops=0, transcendentals=0,
            bytes_accessed=2 * seq_padded * dim * itemsize),
    )(ids_padded, pe_weight)


def learned_positional_encoding(pe_weight, seq_length, x=None, position_ids=None):
    """Pallas equivalent of LearnedPositionalEncoding.forward.

    pe_weight: (max_position_embeddings, embedding_dim)
    x:         accepted but unused (as in the PyTorch module)
    returns:   position_ids.shape + (embedding_dim,); (1, seq_length, dim) by default.
    """
    del x                                        # unused by the reference forward
    max_pos, dim = pe_weight.shape

    if position_ids is None:
        # Fast path: arange ids == the first seq_length rows of the table.
        return pe_weight[:seq_length][None, :, :]

    position_ids = jnp.asarray(position_ids)
    out_shape = position_ids.shape + (dim,)
    ids = position_ids.reshape(-1).astype(jnp.int32)
    # Clamp to valid rows: prevents OOB DMA source indices (PyTorch would raise).
    ids = jnp.clip(ids, 0, max_pos - 1)

    seq = ids.shape[0]
    # Rows gathered per grid step: 8-aligned, amortizes the ~0.35us/step grid
    # overhead, kept <= 64 so the unrolled DMA-issue loop stays small.
    tile_rows = min(64, _round_up(seq, 8))
    seq_padded = _round_up(seq, tile_rows)
    ids_padded = jnp.pad(ids, (0, seq_padded - seq))  # pad rows gather row 0 (discarded)

    out = _gather_rows(ids_padded, pe_weight, tile_rows=tile_rows)
    # NOTE: for very small embedding_dim (<128) the HBM writeback is lane-sparse;
    # real IPT configs use dim >= 128 which makes the stores fully lane-dense.
    return out[:seq].reshape(out_shape)


if __name__ == "__main__":
    # Small shapes consistent with the module's __init__.
    max_position_embeddings = 64
    embedding_dim = 32
    seq_length = 8
    batch = 2

    key = jax.random.PRNGKey(0)
    k_pe, k_x, k_ids = jax.random.split(key, 3)

    # nn.Embedding default init: N(0, 1)
    pe_weight = jax.random.normal(
        k_pe, (max_position_embeddings, embedding_dim), dtype=jnp.float32)
    # x is accepted by forward but unused for compute.
    x = jax.random.normal(k_x, (batch, seq_length, embedding_dim), dtype=jnp.float32)

    # 1) Default path (position_ids=None): zero-cost slice fast path.
    out_default = learned_positional_encoding(pe_weight, seq_length, x=x)
    out_default = jax.block_until_ready(out_default)
    assert out_default.shape == (1, seq_length, embedding_dim), out_default.shape
    assert jnp.allclose(out_default, pe_weight[:seq_length][None], atol=1e-6)

    # 2) Kernel path with explicit arange ids -> must match the fast path.
    arange_ids = jnp.arange(seq_length, dtype=jnp.int32)[None, :]
    out_arange = learned_positional_encoding(
        pe_weight, seq_length, x=x, position_ids=arange_ids)
    out_arange = jax.block_until_ready(out_arange)
    assert out_arange.shape == (1, seq_length, embedding_dim), out_arange.shape
    assert jnp.allclose(out_arange, out_default, atol=1e-6), "arange gather mismatch"

    # 3) Kernel path with arbitrary ids -> must match a plain table gather.
    rand_ids = jax.random.randint(
        k_ids, (1, seq_length), 0, max_position_embeddings, dtype=jnp.int32)
    out_rand = learned_positional_encoding(
        pe_weight, seq_length, x=x, position_ids=rand_ids)
    out_rand = jax.block_until_ready(out_rand)
    assert jnp.allclose(out_rand, pe_weight[rand_ids[0]][None], atol=1e-6), \
        "random-id gather mismatch"

    # 4) Batched ids (batch > 1) exercise the flatten/reshape path.
    batch_ids = jax.random.randint(
        jax.random.PRNGKey(1), (batch, seq_length), 0, max_position_embeddings,
        dtype=jnp.int32)
    out_batch = learned_positional_encoding(
        pe_weight, seq_length, x=x, position_ids=batch_ids)
    out_batch = jax.block_until_ready(out_batch)
    assert out_batch.shape == (batch, seq_length, embedding_dim), out_batch.shape
    assert jnp.allclose(out_batch, pe_weight[batch_ids], atol=1e-6), \
        "batched-id gather mismatch"

    print("KERNEL_OK")
</pallas_src>

<mosaic_0001>
module attributes {stable_mosaic.version = 11 : i64} {
  func.func @_gather_rows_kernel(%arg0: i32, %arg1: memref<8xi32, #tpu.memory_space<smem>>, %arg2: memref<64x32xf32, #tpu.memory_space<any>>, %arg3: memref<8x32xf32, #tpu.memory_space<vmem>>, %arg4: memref<!tpu.dma_semaphore, #tpu.memory_space<semaphore_mem>>) attributes {dimension_semantics = [#tpu.dimension_semantics<parallel>], iteration_bounds = array<i64: 1>, scalar_prefetch = 1 : i64, scratch_operands = 1 : i64, tpu.core_type = #tpu.core_type<tc>, window_params = [{}, {transform_indices = @transform_1, window_bounds = array<i64: 8, 32>}]} {
    %c8_i32 = arith.constant 8 : i32
    %0 = arith.muli %arg0, %c8_i32 : i32
    %c0_i32 = arith.constant 0 : i32
    %1 = arith.addi %0, %c0_i32 : i32
    %2 = arith.index_cast %1 : i32 to index
    %3 = memref.load %arg1[%2] : memref<8xi32, #tpu.memory_space<smem>>
    %c0_i32_0 = arith.constant 0 : i32
    %c0_i32_1 = arith.constant 0 : i32
    %4 = tpu.memref_slice %arg2[%3, %c0_i32_1] : memref<64x32xf32, #tpu.memory_space<any>> -> memref<1x32xf32, #tpu.memory_space<any>>
    %5 = tpu.memref_squeeze %4 : memref<1x32xf32, #tpu.memory_space<any>> -> memref<32xf32, #tpu.memory_space<any>>
    %c0_i32_2 = arith.constant 0 : i32
    %6 = tpu.memref_slice %arg3[%c0_i32_0, %c0_i32_2] : memref<8x32xf32, #tpu.memory_space<vmem>> -> memref<1x32xf32, #tpu.memory_space<vmem>>
    %7 = tpu.memref_squeeze %6 : memref<1x32xf32, #tpu.memory_space<vmem>> -> memref<32xf32, #tpu.memory_space<vmem>>
    tpu.enqueue_dma source(%5 : memref<32xf32, #tpu.memory_space<any>>) target(%7 : memref<32xf32, #tpu.memory_space<vmem>>) target_semaphore(%arg4 : memref<!tpu.dma_semaphore, #tpu.memory_space<semaphore_mem>>)
    %c1_i32 = arith.constant 1 : i32
    %8 = arith.addi %0, %c1_i32 : i32
    %9 = arith.index_cast %8 : i32 to index
    %10 = memref.load %arg1[%9] : memref<8xi32, #tpu.memory_space<smem>>
    %c1_i32_3 = arith.constant 1 : i32
    %c0_i32_4 = arith.constant 0 : i32
    %11 = tpu.memref_slice %arg2[%10, %c0_i32_4] : memref<64x32xf32, #tpu.memory_space<any>> -> memref<1x32xf32, #tpu.memory_space<any>>
    %12 = tpu.memref_squeeze %11 : memref<1x32xf32, #tpu.memory_space<any>> -> memref<32xf32, #tpu.memory_space<any>>
    %c0_i32_5 = arith.constant 0 : i32
    %13 = tpu.memref_slice %arg3[%c1_i32_3, %c0_i32_5] : memref<8x32xf32, #tpu.memory_space<vmem>> -> memref<1x32xf32, #tpu.memory_space<vmem>>
    %14 = tpu.memref_squeeze %13 : memref<1x32xf32, #tpu.memory_space<vmem>> -> memref<32xf32, #tpu.memory_space<vmem>>
    tpu.enqueue_dma source(%12 : memref<32xf32, #tpu.memory_space<any>>) target(%14 : memref<32xf32, #tpu.memory_space<vmem>>) target_semaphore(%arg4 : memref<!tpu.dma_semaphore, #tpu.memory_space<semaphore_mem>>)
    %c2_i32 = arith.constant 2 : i32
    %15 = arith.addi %0, %c2_i32 : i32
    %16 = arith.index_cast %15 : i32 to index
    %17 = memref.load %arg1[%16] : memref<8xi32, #tpu.memory_space<smem>>
    %c2_i32_6 = arith.constant 2 : i32
    %c0_i32_7 = arith.constant 0 : i32
    %18 = tpu.memref_slice %arg2[%17, %c0_i32_7] : memref<64x32xf32, #tpu.memory_space<any>> -> memref<1x32xf32, #tpu.memory_space<any>>
    %19 = tpu.memref_squeeze %18 : memref<1x32xf32, #tpu.memory_space<any>> -> memref<32xf32, #tpu.memory_space<any>>
    %c0_i32_8 = arith.constant 0 : i32
    %20 = tpu.memref_slice %arg3[%c2_i32_6, %c0_i32_8] : memref<8x32xf32, #tpu.memory_space<vmem>> -> memref<1x32xf32, #tpu.memory_space<vmem>>
    %21 = tpu.memref_squeeze %20 : memref<1x32xf32, #tpu.memory_space<vmem>> -> memref<32xf32, #tpu.memory_space<vmem>>
    tpu.enqueue_dma source(%19 : memref<32xf32, #tpu.memory_space<any>>) target(%21 : memref<32xf32, #tpu.memory_space<vmem>>) target_semaphore(%arg4 : memref<!tpu.dma_semaphore, #tpu.memory_space<semaphore_mem>>)
    %c3_i32 = arith.constant 3 : i32
    %22 = arith.addi %0, %c3_i32 : i32
    %23 = arith.index_cast %22 : i32 to index
    %24 = memref.load %arg1[%23] : memref<8xi32, #tpu.memory_space<smem>>
    %c3_i32_9 = arith.constant 3 : i32
    %c0_i32_10 = arith.constant 0 : i32
    %25 = tpu.memref_slice %arg2[%24, %c0_i32_10] : memref<64x32xf32, #tpu.memory_space<any>> -> memref<1x32xf32, #tpu.memory_space<any>>
    %26 = tpu.memref_squeeze %25 : memref<1x32xf32, #tpu.memory_space<any>> -> memref<32xf32, #tpu.memory_space<any>>
    %c0_i32_11 = arith.constant 0 : i32
    %27 = tpu.memref_slice %arg3[%c3_i32_9, %c0_i32_11] : memref<8x32xf32, #tpu.memory_space<vmem>> -> memref<1x32xf32, #tpu.memory_space<vmem>>
    %28 = tpu.memref_squeeze %27 : memref<1x32xf32, #tpu.memory_space<vmem>> -> memref<32xf32, #tpu.memory_space<vmem>>
    tpu.enqueue_dma source(%26 : memref<32xf32, #tpu.memory_space<any>>) target(%28 : memref<32xf32, #tpu.memory_space<vmem>>) target_semaphore(%arg4 : memref<!tpu.dma_semaphore, #tpu.memory_space<semaphore_mem>>)
    %c4_i32 = arith.constant 4 : i32
    %29 = arith.addi %0, %c4_i32 : i32
    %30 = arith.index_cast %29 : i32 to index
    %31 = memref.load %arg1[%30] : memref<8xi32, #tpu.memory_space<smem>>
    %c4_i32_12 = arith.constant 4 : i32
    %c0_i32_13 = arith.constant 0 : i32
    %32 = tpu.memref_slice %arg2[%31, %c0_i32_13] : memref<64x32xf32, #tpu.memory_space<any>> -> memref<1x32xf32, #tpu.memory_space<any>>
    %33 = tpu.memref_squeeze %32 : memref<1x32xf32, #tpu.memory_space<any>> -> memref<32xf32, #tpu.memory_space<any>>
    %c0_i32_14 = arith.constant 0 : i32
    %34 = tpu.memref_slice %arg3[%c4_i32_12, %c0_i32_14] : memref<8x32xf32, #tpu.memory_space<vmem>> -> memref<1x32xf32, #tpu.memory_space<vmem>>
    %35 = tpu.memref_squeeze %34 : memref<1x32xf32, #tpu.memory_space<vmem>> -> memref<32xf32, #tpu.memory_space<vmem>>
    tpu.enqueue_dma source(%33 : memref<32xf32, #tpu.memory_space<any>>) target(%35 : memref<32xf32, #tpu.memory_space<vmem>>) target_semaphore(%arg4 : memref<!tpu.dma_semaphore, #tpu.memory_space<semaphore_mem>>)
    %c5_i32 = arith.constant 5 : i32
    %36 = arith.addi %0, %c5_i32 : i32
    %37 = arith.index_cast %36 : i32 to index
    %38 = memref.load %arg1[%37] : memref<8xi32, #tpu.memory_space<smem>>
    %c5_i32_15 = arith.constant 5 : i32
    %c0_i32_16 = arith.constant 0 : i32
    %39 = tpu.memref_slice %arg2[%38, %c0_i32_16] : memref<64x32xf32, #tpu.memory_space<any>> -> memref<1x32xf32, #tpu.memory_space<any>>
    %40 = tpu.memref_squeeze %39 : memref<1x32xf32, #tpu.memory_space<any>> -> memref<32xf32, #tpu.memory_space<any>>
    %c0_i32_17 = arith.constant 0 : i32
    %41 = tpu.memref_slice %arg3[%c5_i32_15, %c0_i32_17] : memref<8x32xf32, #tpu.memory_space<vmem>> -> memref<1x32xf32, #tpu.memory_space<vmem>>
    %42 = tpu.memref_squeeze %41 : memref<1x32xf32, #tpu.memory_space<vmem>> -> memref<32xf32, #tpu.memory_space<vmem>>
    tpu.enqueue_dma source(%40 : memref<32xf32, #tpu.memory_space<any>>) target(%42 : memref<32xf32, #tpu.memory_space<vmem>>) target_semaphore(%arg4 : memref<!tpu.dma_semaphore, #tpu.memory_space<semaphore_mem>>)
    %c6_i32 = arith.constant 6 : i32
    %43 = arith.addi %0, %c6_i32 : i32
    %44 = arith.index_cast %43 : i32 to index
    %45 = memref.load %arg1[%44] : memref<8xi32, #tpu.memory_space<smem>>
    %c6_i32_18 = arith.constant 6 : i32
    %c0_i32_19 = arith.constant 0 : i32
    %46 = tpu.memref_slice %arg2[%45, %c0_i32_19] : memref<64x32xf32, #tpu.memory_space<any>> -> memref<1x32xf32, #tpu.memory_space<any>>
    %47 = tpu.memref_squeeze %46 : memref<1x32xf32, #tpu.memory_space<any>> -> memref<32xf32, #tpu.memory_space<any>>
    %c0_i32_20 = arith.constant 0 : i32
    %48 = tpu.memref_slice %arg3[%c6_i32_18, %c0_i32_20] : memref<8x32xf32, #tpu.memory_space<vmem>> -> memref<1x32xf32, #tpu.memory_space<vmem>>
    %49 = tpu.memref_squeeze %48 : memref<1x32xf32, #tpu.memory_space<vmem>> -> memref<32xf32, #tpu.memory_space<vmem>>
    tpu.enqueue_dma source(%47 : memref<32xf32, #tpu.memory_space<any>>) target(%49 : memref<32xf32, #tpu.memory_space<vmem>>) target_semaphore(%arg4 : memref<!tpu.dma_semaphore, #tpu.memory_space<semaphore_mem>>)
    %c7_i32 = arith.constant 7 : i32
    %50 = arith.addi %0, %c7_i32 : i32
    %51 = arith.index_cast %50 : i32 to index
    %52 = memref.load %arg1[%51] : memref<8xi32, #tpu.memory_space<smem>>
    %c7_i32_21 = arith.constant 7 : i32
    %c0_i32_22 = arith.constant 0 : i32
    %53 = tpu.memref_slice %arg2[%52, %c0_i32_22] : memref<64x32xf32, #tpu.memory_space<any>> -> memref<1x32xf32, #tpu.memory_space<any>>
    %54 = tpu.memref_squeeze %53 : memref<1x32xf32, #tpu.memory_space<any>> -> memref<32xf32, #tpu.memory_space<any>>
    %c0_i32_23 = arith.constant 0 : i32
    %55 = tpu.memref_slice %arg3[%c7_i32_21, %c0_i32_23] : memref<8x32xf32, #tpu.memory_space<vmem>> -> memref<1x32xf32, #tpu.memory_space<vmem>>
    %56 = tpu.memref_squeeze %55 : memref<1x32xf32, #tpu.memory_space<vmem>> -> memref<32xf32, #tpu.memory_space<vmem>>
    tpu.enqueue_dma source(%54 : memref<32xf32, #tpu.memory_space<any>>) target(%56 : memref<32xf32, #tpu.memory_space<vmem>>) target_semaphore(%arg4 : memref<!tpu.dma_semaphore, #tpu.memory_space<semaphore_mem>>)
    %c0_i32_24 = arith.constant 0 : i32
    %c0_i32_25 = arith.constant 0 : i32
    %57 = tpu.memref_slice %arg2[%3, %c0_i32_25] : memref<64x32xf32, #tpu.memory_space<any>> -> memref<1x32xf32, #tpu.memory_space<any>>
    %58 = tpu.memref_squeeze %57 : memref<1x32xf32, #tpu.memory_space<any>> -> memref<32xf32, #tpu.memory_space<any>>
    %c0_i32_26 = arith.constant 0 : i32
    %59 = tpu.memref_slice %arg3[%c0_i32_24, %c0_i32_26] : memref<8x32xf32, #tpu.memory_space<vmem>> -> memref<1x32xf32, #tpu.memory_space<vmem>>
    %60 = tpu.memref_squeeze %59 : memref<1x32xf32, #tpu.memory_space<vmem>> -> memref<32xf32, #tpu.memory_space<vmem>>
    tpu.wait_dma2 semaphore(%arg4 : memref<!tpu.dma_semaphore, #tpu.memory_space<semaphore_mem>>) src(%58 : memref<32xf32, #tpu.memory_space<any>>) dst(%60 : memref<32xf32, #tpu.memory_space<vmem>>)
    %c1_i32_27 = arith.constant 1 : i32
    %c0_i32_28 = arith.constant 0 : i32
    %61 = tpu.memref_slice %arg2[%10, %c0_i32_28] : memref<64x32xf32, #tpu.memory_space<any>> -> memref<1x32xf32, #tpu.memory_space<any>>
    %62 = tpu.memref_squeeze %61 : memref<1x32xf32, #tpu.memory_space<any>> -> memref<32xf32, #tpu.memory_space<any>>
    %c0_i32_29 = arith.constant 0 : i32
    %63 = tpu.memref_slice %arg3[%c1_i32_27, %c0_i32_29] : memref<8x32xf32, #tpu.memory_space<vmem>> -> memref<1x32xf32, #tpu.memory_space<vmem>>
    %64 = tpu.memref_squeeze %63 : memref<1x32xf32, #tpu.memory_space<vmem>> -> memref<32xf32, #tpu.memory_space<vmem>>
    tpu.wait_dma2 semaphore(%arg4 : memref<!tpu.dma_semaphore, #tpu.memory_space<semaphore_mem>>) src(%62 : memref<32xf32, #tpu.memory_space<any>>) dst(%64 : memref<32xf32, #tpu.memory_space<vmem>>)
    %c2_i32_30 = arith.constant 2 : i32
    %c0_i32_31 = arith.constant 0 : i32
    %65 = tpu.memref_slice %arg2[%17, %c0_i32_31] : memref<64x32xf32, #tpu.memory_space<any>> -> memref<1x32xf32, #tpu.memory_space<any>>
    %66 = tpu.memref_squeeze %65 : memref<1x32xf32, #tpu.memory_space<any>> -> memref<32xf32, #tpu.memory_space<any>>
    %c0_i32_32 = arith.constant 0 : i32
    %67 = tpu.memref_slice %arg3[%c2_i32_30, %c0_i32_32] : memref<8x32xf32, #tpu.memory_space<vmem>> -> memref<1x32xf32, #tpu.memory_space<vmem>>
    %68 = tpu.memref_squeeze %67 : memref<1x32xf32, #tpu.memory_space<vmem>> -> memref<32xf32, #tpu.memory_space<vmem>>
    tpu.wait_dma2 semaphore(%arg4 : memref<!tpu.dma_semaphore, #tpu.memory_space<semaphore_mem>>) src(%66 : memref<32xf32, #tpu.memory_space<any>>) dst(%68 : memref<32xf32, #tpu.memory_space<vmem>>)
    %c3_i32_33 = arith.constant 3 : i32
    %c0_i32_34 = arith.constant 0 : i32
    %69 = tpu.memref_slice %arg2[%24, %c0_i32_34] : memref<64x32xf32, #tpu.memory_space<any>> -> memref<1x32xf32, #tpu.memory_space<any>>
    %70 = tpu.memref_squeeze %69 : memref<1x32xf32, #tpu.memory_space<any>> -> memref<32xf32, #tpu.memory_space<any>>
    %c0_i32_35 = arith.constant 0 : i32
    %71 = tpu.memref_slice %arg3[%c3_i32_33, %c0_i32_35] : memref<8x32xf32, #tpu.memory_space<vmem>> -> memref<1x32xf32, #tpu.memory_space<vmem>>
    %72 = tpu.memref_squeeze %71 : memref<1x32xf32, #tpu.memory_space<vmem>> -> memref<32xf32, #tpu.memory_space<vmem>>
    tpu.wait_dma2 semaphore(%arg4 : memref<!tpu.dma_semaphore, #tpu.memory_space<semaphore_mem>>) src(%70 : memref<32xf32, #tpu.memory_space<any>>) dst(%72 : memref<32xf32, #tpu.memory_space<vmem>>)
    %c4_i32_36 = arith.constant 4 : i32
    %c0_i32_37 = arith.constant 0 : i32
    %73 = tpu.memref_slice %arg2[%31, %c0_i32_37] : memref<64x32xf32, #tpu.memory_space<any>> -> memref<1x32xf32, #tpu.memory_space<any>>
    %74 = tpu.memref_squeeze %73 : memref<1x32xf32, #tpu.memory_space<any>> -> memref<32xf32, #tpu.memory_space<any>>
    %c0_i32_38 = arith.constant 0 : i32
    %75 = tpu.memref_slice %arg3[%c4_i32_36, %c0_i32_38] : memref<8x32xf32, #tpu.memory_space<vmem>> -> memref<1x32xf32, #tpu.memory_space<vmem>>
    %76 = tpu.memref_squeeze %75 : memref<1x32xf32, #tpu.memory_space<vmem>> -> memref<32xf32, #tpu.memory_space<vmem>>
    tpu.wait_dma2 semaphore(%arg4 : memref<!tpu.dma_semaphore, #tpu.memory_space<semaphore_mem>>) src(%74 : memref<32xf32, #tpu.memory_space<any>>) dst(%76 : memref<32xf32, #tpu.memory_space<vmem>>)
    %c5_i32_39 = arith.constant 5 : i32
    %c0_i32_40 = arith.constant 0 : i32
    %77 = tpu.memref_slice %arg2[%38, %c0_i32_40] : memref<64x32xf32, #tpu.memory_space<any>> -> memref<1x32xf32, #tpu.memory_space<any>>
    %78 = tpu.memref_squeeze %77 : memref<1x32xf32, #tpu.memory_space<any>> -> memref<32xf32, #tpu.memory_space<any>>
    %c0_i32_41 = arith.constant 0 : i32
    %79 = tpu.memref_slice %arg3[%c5_i32_39, %c0_i32_41] : memref<8x32xf32, #tpu.memory_space<vmem>> -> memref<1x32xf32, #tpu.memory_space<vmem>>
    %80 = tpu.memref_squeeze %79 : memref<1x32xf32, #tpu.memory_space<vmem>> -> memref<32xf32, #tpu.memory_space<vmem>>
    tpu.wait_dma2 semaphore(%arg4 : memref<!tpu.dma_semaphore, #tpu.memory_space<semaphore_mem>>) src(%78 : memref<32xf32, #tpu.memory_space<any>>) dst(%80 : memref<32xf32, #tpu.memory_space<vmem>>)
    %c6_i32_42 = arith.constant 6 : i32
    %c0_i32_43 = arith.constant 0 : i32
    %81 = tpu.memref_slice %arg2[%45, %c0_i32_43] : memref<64x32xf32, #tpu.memory_space<any>> -> memref<1x32xf32, #tpu.memory_space<any>>
    %82 = tpu.memref_squeeze %81 : memref<1x32xf32, #tpu.memory_space<any>> -> memref<32xf32, #tpu.memory_space<any>>
    %c0_i32_44 = arith.constant 0 : i32
    %83 = tpu.memref_slice %arg3[%c6_i32_42, %c0_i32_44] : memref<8x32xf32, #tpu.memory_space<vmem>> -> memref<1x32xf32, #tpu.memory_space<vmem>>
    %84 = tpu.memref_squeeze %83 : memref<1x32xf32, #tpu.memory_space<vmem>> -> memref<32xf32, #tpu.memory_space<vmem>>
    tpu.wait_dma2 semaphore(%arg4 : memref<!tpu.dma_semaphore, #tpu.memory_space<semaphore_mem>>) src(%82 : memref<32xf32, #tpu.memory_space<any>>) dst(%84 : memref<32xf32, #tpu.memory_space<vmem>>)
    %c7_i32_45 = arith.constant 7 : i32
    %c0_i32_46 = arith.constant 0 : i32
    %85 = tpu.memref_slice %arg2[%52, %c0_i32_46] : memref<64x32xf32, #tpu.memory_space<any>> -> memref<1x32xf32, #tpu.memory_space<any>>
    %86 = tpu.memref_squeeze %85 : memref<1x32xf32, #tpu.memory_space<any>> -> memref<32xf32, #tpu.memory_space<any>>
    %c0_i32_47 = arith.constant 0 : i32
    %87 = tpu.memref_slice %arg3[%c7_i32_45, %c0_i32_47] : memref<8x32xf32, #tpu.memory_space<vmem>> -> memref<1x32xf32, #tpu.memory_space<vmem>>
    %88 = tpu.memref_squeeze %87 : memref<1x32xf32, #tpu.memory_space<vmem>> -> memref<32xf32, #tpu.memory_space<vmem>>
    tpu.wait_dma2 semaphore(%arg4 : memref<!tpu.dma_semaphore, #tpu.memory_space<semaphore_mem>>) src(%86 : memref<32xf32, #tpu.memory_space<any>>) dst(%88 : memref<32xf32, #tpu.memory_space<vmem>>)
    return
  }
  func.func @transform_1(%arg0: i32, %arg1: memref<8xi32, #tpu.memory_space<smem>>) -> (i32, i32) {
    %c0_i32 = arith.constant 0 : i32
    %c0_i32_0 = arith.constant 0 : i32
    return %arg0, %c0_i32 : i32, i32
  }
}

</mosaic_0001>

<llo_original>
// kernel: _gather_rows.1
$region0: #{_gather_rows.1}
  #allocation0 [shape = 'u32[]', space=smem, size = 0x4, offset = 0x4, fixed_abs, tag = 'smem constant byte address 0x4 - core index']
  #allocation1 [shape = 'u32[144,128]{1,0:T(1,128)}', space=vmem, size = 0x12000, scoped, tag = 'internal scratch']
  #allocation2 [shape = 's32[1]{0}', space=sflag, size = 0x4, scoped, tag = 'scratch operand']
  #allocation3 [shape = 's32[1]{0}', space=sflag, size = 0x4, scoped, tag = 'scoped memory for _gather_rows.1']
  #allocation4 [shape = 'u8[512]{0}', space=smem, size = 0x200, scoped, tag = 'prefetched SMEM operand 0']
  #allocation7 [shape = 's32[]', space=sflag, size = 0x4, offset = 0, fixed_abs, tag = 'sflag constant byte address 0x0 - dummy sync flag']
  #allocation8 [shape = 's32[]', space=sflag, size = 0x4, offset = 0, fixed_abs, tag = 'sflag constant byte address 0x0 - dummy sync flag']
  #allocation9 [shape = 's32[]', space=sflag, size = 0x4, offset = 0, fixed_abs, tag = 'sflag constant byte address 0x0 - dummy sync flag']
  #allocation10 [shape = 's32[]', space=sflag, size = 0x4, offset = 0, fixed_abs, tag = 'sflag constant byte address 0x0 - dummy sync flag']
  #allocation11 [shape = 's32[]', space=sflag, size = 0x4, offset = 0, fixed_abs, tag = 'sflag constant byte address 0x0 - dummy sync flag']
  #allocation12 [shape = 's32[]', space=sflag, size = 0x4, offset = 0, fixed_abs, tag = 'sflag constant byte address 0x0 - dummy sync flag']
  #allocation13 [shape = 's32[]', space=sflag, size = 0x4, offset = 0, fixed_abs, tag = 'sflag constant byte address 0x0 - dummy sync flag']
  #allocation14 [shape = 's32[]', space=sflag, size = 0x4, offset = 0, fixed_abs, tag = 'sflag constant byte address 0x0 - dummy sync flag']
  %s0 = inlined_call_operand.vmem [shape: s32[8], index: 0, kind: input, shape index: {}]
  %s1 = inlined_call_operand.vmem [shape: f32[64,32], index: 1, kind: input, shape index: {}]
  %s2 = inlined_call_operand.hbm [shape: f32[8,32], index: 2, kind: output, shape index: {}]
  %s3 = sld [smem:[#allocation0]]
  $region250: #{_gather_rows.1} parent=0
    _
  %s5 = ssub.s32 1, %s3
  %s6 = scalar_select 0, %s5, %s3
  %s7 = sshll.u32 %s0, 4
  %s8 = int_to_ptr.vmem [resolvable:$true] %s7
  %10 = dma.vmem_to_smem %s8, 16, [#allocation4], [#allocation3]
  %11 = dma.done [#allocation3], 16
  %12 = sfence
  $region1: #{_gather_rows.1} parent=0
    #allocation5 [shape = 'u8[4096]{0}', space=vmem, size = 0x1000, scoped, tag = 'output window, operand 0, single buffered']
    #allocation6 [shape = 's32[1]{0}', space=sflag, size = 0x4, scoped, tag = 'scoped memory for _gather_rows.1']
    %13 = vsyncpa [#allocation6], 0
    %s14 = smul.u32 0, 8
    %s15 = sld [smem:[#allocation4 + %s14]]
    %s16 = scalar_lea.vmem %s1, %s15
    %p18 = scmp.lt.u32.totalorder 1, 8
    %p19 = pneg %p18
    // Predicated region
    $region2: #{_gather_rows.1} parent=1 // pred_check
      _
    $region3: #{_gather_rows.1} parent=1 // pred_check_branch
      %21 = sbr.rel (%p18) target = $region5
    $region4: #{_gather_rows.1} parent=1 // pred_region
      %s36 = sand.u32 1, 7
      %p37 = scmp.eq.s32.totalorder %s36, 0
      %p38 = pneg %p37
      // Predicated region
      $region17: #{_gather_rows.1} parent=4 // pred_check
        _
      $region18: #{_gather_rows.1} parent=4 // pred_check_branch
        %40 = sbr.rel (%p37) target = $region20
      $region19: #{_gather_rows.1} parent=4 // pred_region
        %s41 = sand.u32 1, 7
        %s42 = ssub.s32 1, %s41
        %s43 = scalar_lea.vmem %s16, %s42
        %s44 = ssub.s32 1, %s41
        %s45 = scalar_lea.vmem [#allocation5], %s44
        %s46 = sshllo.u32 0, %s41
        loop: start=0, step=1, limit=1
        $region21: #{_gather_rows.1} parent=19 // loop_pre_header
          _
        $region22: #{_gather_rows.1} parent=19 // loop_header
          %s48 = sphi 0, %s52
          %p49 = scmp.ge.s32.totalorder %s48, 1
          %s53 = sphi %s43, %s43
          %s54 = sphi %s45, %s45
        $region23: #{_gather_rows.1} parent=19 // loop_header_branch
          %51 = sbr.rel (%p49) target = $region27
        $region24: #{_gather_rows.1} parent=19 // loop_body
          %v55 = vld [vmem:[%s53] sm:%s46]
          %56 = vst [vmem:[%s54] sm:%s46] %v55
        $region25: #{_gather_rows.1} parent=19 // loop_footer
          %s52 = sadd.s32 1, %s48
        $region26: #{_gather_rows.1} parent=19 // loop_footer_branch
          %47 = sbr.rel target = $region22
        $region27: #{_gather_rows.1} parent=19 // loop_exit
          _
      $region20: #{_gather_rows.1} parent=4 // pred_fallthru
        _
    $region5: #{_gather_rows.1} parent=1 // pred_fallthru
      _
    // Predicated region
    $region6: #{_gather_rows.1} parent=1 // pred_check
      %p22 = pneg %p18
    $region7: #{_gather_rows.1} parent=1 // pred_check_branch
      %24 = sbr.rel (%p22) target = $region9
    $region8: #{_gather_rows.1} parent=1 // pred_region
      %s25 = sshllo.u32 0, 1
      loop: start=0, step=1, limit=1
      $region10: #{_gather_rows.1} parent=8 // loop_pre_header
        _
      $region11: #{_gather_rows.1} parent=8 // loop_header
        %s27 = sphi 0, %s31
        %p28 = scmp.ge.s32.totalorder %s27, 1
        %s32 = sphi %s16, %s16
        %s33 = sphi [#allocation5], [#allocation5]
      $region12: #{_gather_rows.1} parent=8 // loop_header_branch
        %30 = sbr.rel (%p28) target = $region16
      $region13: #{_gather_rows.1} parent=8 // loop_body
        %v34 = vld [vmem:[%s32] sm:%s25]
        %35 = vst [vmem:[%s33] sm:%s25] %v34
      $region14: #{_gather_rows.1} parent=8 // loop_footer
        %s31 = sadd.s32 1, %s27
      $region15: #{_gather_rows.1} parent=8 // loop_footer_branch
        %26 = sbr.rel target = $region11
      $region16: #{_gather_rows.1} parent=8 // loop_exit
        _
    $region9: #{_gather_rows.1} parent=1 // pred_fallthru
      _
    // Predicated region
    $region28: #{_gather_rows.1} parent=1 // pred_check
      _
    $region29: #{_gather_rows.1} parent=1 // pred_check_branch
      %59 = sbr.rel (0) target = $region31
    $region30: #{_gather_rows.1} parent=1 // pred_region
      %60 = vsyncadd [#allocation2], 16
    $region31: #{_gather_rows.1} parent=1 // pred_fallthru
      _
    %s61 = sadd.s32 %s14, 1
    %s62 = sld [smem:[#allocation4 + %s61]]
    %s63 = scalar_lea.vmem %s1, %s62
    %s64 = scalar_lea.vmem [#allocation5], 1
    %p66 = scmp.lt.u32.totalorder 1, 8
    %p67 = pneg %p66
    // Predicated region
    $region32: #{_gather_rows.1} parent=1 // pred_check
      _
    $region33: #{_gather_rows.1} parent=1 // pred_check_branch
      %69 = sbr.rel (%p66) target = $region35
    $region34: #{_gather_rows.1} parent=1 // pred_region
      %s84 = sand.u32 1, 7
      %p85 = scmp.eq.s32.totalorder %s84, 0
      %p86 = pneg %p85
      // Predicated region
      $region47: #{_gather_rows.1} parent=34 // pred_check
        _
      $region48: #{_gather_rows.1} parent=34 // pred_check_branch
        %88 = sbr.rel (%p85) target = $region50
      $region49: #{_gather_rows.1} parent=34 // pred_region
        %s89 = sand.u32 1, 7
        %s90 = ssub.s32 1, %s89
        %s91 = scalar_lea.vmem %s63, %s90
        %s92 = ssub.s32 1, %s89
        %s93 = scalar_lea.vmem %s64, %s92 [#allocation5]
        %s94 = sshllo.u32 0, %s89
        loop: start=0, step=1, limit=1
        $region51: #{_gather_rows.1} parent=49 // loop_pre_header
          _
        $region52: #{_gather_rows.1} parent=49 // loop_header
          %s96 = sphi 0, %s100
          %p97 = scmp.ge.s32.totalorder %s96, 1
          %s101 = sphi %s91, %s91
          %s102 = sphi %s93, %s93
        $region53: #{_gather_rows.1} parent=49 // loop_header_branch
          %99 = sbr.rel (%p97) target = $region57
        $region54: #{_gather_rows.1} parent=49 // loop_body
          %v103 = vld [vmem:[%s101] sm:%s94]
          %104 = vst [vmem:[%s102] sm:%s94] %v103
        $region55: #{_gather_rows.1} parent=49 // loop_footer
          %s100 = sadd.s32 1, %s96
        $region56: #{_gather_rows.1} parent=49 // loop_footer_branch
          %95 = sbr.rel target = $region52
        $region57: #{_gather_rows.1} parent=49 // loop_exit
          _
      $region50: #{_gather_rows.1} parent=34 // pred_fallthru
        _
    $region35: #{_gather_rows.1} parent=1 // pred_fallthru
      _
    // Predicated region
    $region36: #{_gather_rows.1} parent=1 // pred_check
      %p70 = pneg %p66
    $region37: #{_gather_rows.1} parent=1 // pred_check_branch
      %72 = sbr.rel (%p70) target = $region39
    $region38: #{_gather_rows.1} parent=1 // pred_region
      %s73 = sshllo.u32 0, 1
      loop: start=0, step=1, limit=1
      $region40: #{_gather_rows.1} parent=38 // loop_pre_header
        _
      $region41: #{_gather_rows.1} parent=38 // loop_header
        %s75 = sphi 0, %s79
        %p76 = scmp.ge.s32.totalorder %s75, 1
        %s80 = sphi %s63, %s63
        %s81 = sphi %s64, %s64
      $region42: #{_gather_rows.1} parent=38 // loop_header_branch
        %78 = sbr.rel (%p76) target = $region46
      $region43: #{_gather_rows.1} parent=38 // loop_body
        %v82 = vld [vmem:[%s80] sm:%s73]
        %83 = vst [vmem:[%s81] sm:%s73] %v82
      $region44: #{_gather_rows.1} parent=38 // loop_footer
        %s79 = sadd.s32 1, %s75
      $region45: #{_gather_rows.1} parent=38 // loop_footer_branch
        %74 = sbr.rel target = $region41
      $region46: #{_gather_rows.1} parent=38 // loop_exit
        _
    $region39: #{_gather_rows.1} parent=1 // pred_fallthru
      _
    // Predicated region
    $region58: #{_gather_rows.1} parent=1 // pred_check
      _
    $region59: #{_gather_rows.1} parent=1 // pred_check_branch
      %107 = sbr.rel (0) target = $region61
    $region60: #{_gather_rows.1} parent=1 // pred_region
      %108 = vsyncadd [#allocation2], 16
    $region61: #{_gather_rows.1} parent=1 // pred_fallthru
      _
    %s109 = sadd.s32 %s14, 2
    %s110 = sld [smem:[#allocation4 + %s109]]
    %s111 = scalar_lea.vmem %s1, %s110
    %s112 = scalar_lea.vmem [#allocation5], 2
    %p114 = scmp.lt.u32.totalorder 1, 8
    %p115 = pneg %p114
    // Predicated region
    $region62: #{_gather_rows.1} parent=1 // pred_check
      _
    $region63: #{_gather_rows.1} parent=1 // pred_check_branch
      %117 = sbr.rel (%p114) target = $region65
    $region64: #{_gather_rows.1} parent=1 // pred_region
      %s132 = sand.u32 1, 7
      %p133 = scmp.eq.s32.totalorder %s132, 0
      %p134 = pneg %p133
      // Predicated region
      $region77: #{_gather_rows.1} parent=64 // pred_check
        _
      $region78: #{_gather_rows.1} parent=64 // pred_check_branch
        %136 = sbr.rel (%p133) target = $region80
      $region79: #{_gather_rows.1} parent=64 // pred_region
        %s137 = sand.u32 1, 7
        %s138 = ssub.s32 1, %s137
        %s139 = scalar_lea.vmem %s111, %s138
        %s140 = ssub.s32 1, %s137
        %s141 = scalar_lea.vmem %s112, %s140 [#allocation5]
        %s142 = sshllo.u32 0, %s137
        loop: start=0, step=1, limit=1
        $region81: #{_gather_rows.1} parent=79 // loop_pre_header
          _
        $region82: #{_gather_rows.1} parent=79 // loop_header
          %s144 = sphi 0, %s148
          %p145 = scmp.ge.s32.totalorder %s144, 1
          %s149 = sphi %s139, %s139
          %s150 = sphi %s141, %s141
        $region83: #{_gather_rows.1} parent=79 // loop_header_branch
          %147 = sbr.rel (%p145) target = $region87
        $region84: #{_gather_rows.1} parent=79 // loop_body
          %v151 = vld [vmem:[%s149] sm:%s142]
          %152 = vst [vmem:[%s150] sm:%s142] %v151
        $region85: #{_gather_rows.1} parent=79 // loop_footer
          %s148 = sadd.s32 1, %s144
        $region86: #{_gather_rows.1} parent=79 // loop_footer_branch
          %143 = sbr.rel target = $region82
        $region87: #{_gather_rows.1} parent=79 // loop_exit
          _
      $region80: #{_gather_rows.1} parent=64 // pred_fallthru
        _
    $region65: #{_gather_rows.1} parent=1 // pred_fallthru
      _
    // Predicated region
    $region66: #{_gather_rows.1} parent=1 // pred_check
      %p118 = pneg %p114
    $region67: #{_gather_rows.1} parent=1 // pred_check_branch
      %120 = sbr.rel (%p118) target = $region69
    $region68: #{_gather_rows.1} parent=1 // pred_region
      %s121 = sshllo.u32 0, 1
      loop: start=0, step=1, limit=1
      $region70: #{_gather_rows.1} parent=68 // loop_pre_header
        _
      $region71: #{_gather_rows.1} parent=68 // loop_header
        %s123 = sphi 0, %s127
        %p124 = scmp.ge.s32.totalorder %s123, 1
        %s128 = sphi %s111, %s111
        %s129 = sphi %s112, %s112
      $region72: #{_gather_rows.1} parent=68 // loop_header_branch
        %126 = sbr.rel (%p124) target = $region76
      $region73: #{_gather_rows.1} parent=68 // loop_body
        %v130 = vld [vmem:[%s128] sm:%s121]
        %131 = vst [vmem:[%s129] sm:%s121] %v130
      $region74: #{_gather_rows.1} parent=68 // loop_footer
        %s127 = sadd.s32 1, %s123
      $region75: #{_gather_rows.1} parent=68 // loop_footer_branch
        %122 = sbr.rel target = $region71
      $region76: #{_gather_rows.1} parent=68 // loop_exit
        _
    $region69: #{_gather_rows.1} parent=1 // pred_fallthru
      _
    // Predicated region
    $region88: #{_gather_rows.1} parent=1 // pred_check
      _
    $region89: #{_gather_rows.1} parent=1 // pred_check_branch
      %155 = sbr.rel (0) target = $region91
    $region90: #{_gather_rows.1} parent=1 // pred_region
      %156 = vsyncadd [#allocation2], 16
    $region91: #{_gather_rows.1} parent=1 // pred_fallthru
      _
    %s157 = sadd.s32 %s14, 3
    %s158 = sld [smem:[#allocation4 + %s157]]
    %s159 = scalar_lea.vmem %s1, %s158
    %s160 = scalar_lea.vmem [#allocation5], 3
    %p162 = scmp.lt.u32.totalorder 1, 8
    %p163 = pneg %p162
    // Predicated region
    $region92: #{_gather_rows.1} parent=1 // pred_check
      _
    $region93: #{_gather_rows.1} parent=1 // pred_check_branch
      %165 = sbr.rel (%p162) target = $region95
    $region94: #{_gather_rows.1} parent=1 // pred_region
      %s180 = sand.u32 1, 7
      %p181 = scmp.eq.s32.totalorder %s180, 0
      %p182 = pneg %p181
      // Predicated region
      $region107: #{_gather_rows.1} parent=94 // pred_check
        _
      $region108: #{_gather_rows.1} parent=94 // pred_check_branch
        %184 = sbr.rel (%p181) target = $region110
      $region109: #{_gather_rows.1} parent=94 // pred_region
        %s185 = sand.u32 1, 7
        %s186 = ssub.s32 1, %s185
        %s187 = scalar_lea.vmem %s159, %s186
        %s188 = ssub.s32 1, %s185
        %s189 = scalar_lea.vmem %s160, %s188 [#allocation5]
        %s190 = sshllo.u32 0, %s185
        loop: start=0, step=1, limit=1
        $region111: #{_gather_rows.1} parent=109 // loop_pre_header
          _
        $region112: #{_gather_rows.1} parent=109 // loop_header
          %s192 = sphi 0, %s196
          %p193 = scmp.ge.s32.totalorder %s192, 1
          %s197 = sphi %s187, %s187
          %s198 = sphi %s189, %s189
        $region113: #{_gather_rows.1} parent=109 // loop_header_branch
          %195 = sbr.rel (%p193) target = $region117
        $region114: #{_gather_rows.1} parent=109 // loop_body
          %v199 = vld [vmem:[%s197] sm:%s190]
          %200 = vst [vmem:[%s198] sm:%s190] %v199
        $region115: #{_gather_rows.1} parent=109 // loop_footer
          %s196 = sadd.s32 1, %s192
        $region116: #{_gather_rows.1} parent=109 // loop_footer_branch
          %191 = sbr.rel target = $region112
        $region117: #{_gather_rows.1} parent=109 // loop_exit
          _
      $region110: #{_gather_rows.1} parent=94 // pred_fallthru
        _
    $region95: #{_gather_rows.1} parent=1 // pred_fallthru
      _
    // Predicated region
    $region96: #{_gather_rows.1} parent=1 // pred_check
      %p166 = pneg %p162
    $region97: #{_gather_rows.1} parent=1 // pred_check_branch
      %168 = sbr.rel (%p166) target = $region99
    $region98: #{_gather_rows.1} parent=1 // pred_region
      %s169 = sshllo.u32 0, 1
      loop: start=0, step=1, limit=1
      $region100: #{_gather_rows.1} parent=98 // loop_pre_header
        _
      $region101: #{_gather_rows.1} parent=98 // loop_header
        %s171 = sphi 0, %s175
        %p172 = scmp.ge.s32.totalorder %s171, 1
        %s176 = sphi %s159, %s159
        %s177 = sphi %s160, %s160
      $region102: #{_gather_rows.1} parent=98 // loop_header_branch
        %174 = sbr.rel (%p172) target = $region106
      $region103: #{_gather_rows.1} parent=98 // loop_body
        %v178 = vld [vmem:[%s176] sm:%s169]
        %179 = vst [vmem:[%s177] sm:%s169] %v178
      $region104: #{_gather_rows.1} parent=98 // loop_footer
        %s175 = sadd.s32 1, %s171
      $region105: #{_gather_rows.1} parent=98 // loop_footer_branch
        %170 = sbr.rel target = $region101
      $region106: #{_gather_rows.1} parent=98 // loop_exit
        _
    $region99: #{_gather_rows.1} parent=1 // pred_fallthru
      _
    // Predicated region
    $region118: #{_gather_rows.1} parent=1 // pred_check
      _
    $region119: #{_gather_rows.1} parent=1 // pred_check_branch
      %203 = sbr.rel (0) target = $region121
    $region120: #{_gather_rows.1} parent=1 // pred_region
      %204 = vsyncadd [#allocation2], 16
    $region121: #{_gather_rows.1} parent=1 // pred_fallthru
      _
    %s205 = sadd.s32 %s14, 4
    %s206 = sld [smem:[#allocation4 + %s205]]
    %s207 = scalar_lea.vmem %s1, %s206
    %s208 = scalar_lea.vmem [#allocation5], 4
    %p210 = scmp.lt.u32.totalorder 1, 8
    %p211 = pneg %p210
    // Predicated region
    $region122: #{_gather_rows.1} parent=1 // pred_check
      _
    $region123: #{_gather_rows.1} parent=1 // pred_check_branch
      %213 = sbr.rel (%p210) target = $region125
    $region124: #{_gather_rows.1} parent=1 // pred_region
      %s228 = sand.u32 1, 7
      %p229 = scmp.eq.s32.totalorder %s228, 0
      %p230 = pneg %p229
      // Predicated region
      $region137: #{_gather_rows.1} parent=124 // pred_check
        _
      $region138: #{_gather_rows.1} parent=124 // pred_check_branch
        %232 = sbr.rel (%p229) target = $region140
      $region139: #{_gather_rows.1} parent=124 // pred_region
        %s233 = sand.u32 1, 7
        %s234 = ssub.s32 1, %s233
        %s235 = scalar_lea.vmem %s207, %s234
        %s236 = ssub.s32 1, %s233
        %s237 = scalar_lea.vmem %s208, %s236 [#allocation5]
        %s238 = sshllo.u32 0, %s233
        loop: start=0, step=1, limit=1
        $region141: #{_gather_rows.1} parent=139 // loop_pre_header
          _
        $region142: #{_gather_rows.1} parent=139 // loop_header
          %s240 = sphi 0, %s244
          %p241 = scmp.ge.s32.totalorder %s240, 1
          %s245 = sphi %s235, %s235
          %s246 = sphi %s237, %s237
        $region143: #{_gather_rows.1} parent=139 // loop_header_branch
          %243 = sbr.rel (%p241) target = $region147
        $region144: #{_gather_rows.1} parent=139 // loop_body
          %v247 = vld [vmem:[%s245] sm:%s238]
          %248 = vst [vmem:[%s246] sm:%s238] %v247
        $region145: #{_gather_rows.1} parent=139 // loop_footer
          %s244 = sadd.s32 1, %s240
        $region146: #{_gather_rows.1} parent=139 // loop_footer_branch
          %239 = sbr.rel target = $region142
        $region147: #{_gather_rows.1} parent=139 // loop_exit
          _
      $region140: #{_gather_rows.1} parent=124 // pred_fallthru
        _
    $region125: #{_gather_rows.1} parent=1 // pred_fallthru
      _
    // Predicated region
    $region126: #{_gather_rows.1} parent=1 // pred_check
      %p214 = pneg %p210
    $region127: #{_gather_rows.1} parent=1 // pred_check_branch
      %216 = sbr.rel (%p214) target = $region129
    $region128: #{_gather_rows.1} parent=1 // pred_region
      %s217 = sshllo.u32 0, 1
      loop: start=0, step=1, limit=1
      $region130: #{_gather_rows.1} parent=128 // loop_pre_header
        _
      $region131: #{_gather_rows.1} parent=128 // loop_header
        %s219 = sphi 0, %s223
        %p220 = scmp.ge.s32.totalorder %s219, 1
        %s224 = sphi %s207, %s207
        %s225 = sphi %s208, %s208
      $region132: #{_gather_rows.1} parent=128 // loop_header_branch
        %222 = sbr.rel (%p220) target = $region136
      $region133: #{_gather_rows.1} parent=128 // loop_body
        %v226 = vld [vmem:[%s224] sm:%s217]
        %227 = vst [vmem:[%s225] sm:%s217] %v226
      $region134: #{_gather_rows.1} parent=128 // loop_footer
        %s223 = sadd.s32 1, %s219
      $region135: #{_gather_rows.1} parent=128 // loop_footer_branch
        %218 = sbr.rel target = $region131
      $region136: #{_gather_rows.1} parent=128 // loop_exit
        _
    $region129: #{_gather_rows.1} parent=1 // pred_fallthru
      _
    // Predicated region
    $region148: #{_gather_rows.1} parent=1 // pred_check
      _
    $region149: #{_gather_rows.1} parent=1 // pred_check_branch
      %251 = sbr.rel (0) target = $region151
    $region150: #{_gather_rows.1} parent=1 // pred_region
      %252 = vsyncadd [#allocation2], 16
    $region151: #{_gather_rows.1} parent=1 // pred_fallthru
      _
    %s253 = sadd.s32 %s14, 5
    %s254 = sld [smem:[#allocation4 + %s253]]
    %s255 = scalar_lea.vmem %s1, %s254
    %s256 = scalar_lea.vmem [#allocation5], 5
    %p258 = scmp.lt.u32.totalorder 1, 8
    %p259 = pneg %p258
    // Predicated region
    $region152: #{_gather_rows.1} parent=1 // pred_check
      _
    $region153: #{_gather_rows.1} parent=1 // pred_check_branch
      %261 = sbr.rel (%p258) target = $region155
    $region154: #{_gather_rows.1} parent=1 // pred_region
      %s276 = sand.u32 1, 7
      %p277 = scmp.eq.s32.totalorder %s276, 0
      %p278 = pneg %p277
      // Predicated region
      $region167: #{_gather_rows.1} parent=154 // pred_check
        _
      $region168: #{_gather_rows.1} parent=154 // pred_check_branch
        %280 = sbr.rel (%p277) target = $region170
      $region169: #{_gather_rows.1} parent=154 // pred_region
        %s281 = sand.u32 1, 7
        %s282 = ssub.s32 1, %s281
        %s283 = scalar_lea.vmem %s255, %s282
        %s284 = ssub.s32 1, %s281
        %s285 = scalar_lea.vmem %s256, %s284 [#allocation5]
        %s286 = sshllo.u32 0, %s281
        loop: start=0, step=1, limit=1
        $region171: #{_gather_rows.1} parent=169 // loop_pre_header
          _
        $region172: #{_gather_rows.1} parent=169 // loop_header
          %s288 = sphi 0, %s292
          %p289 = scmp.ge.s32.totalorder %s288, 1
          %s293 = sphi %s283, %s283
          %s294 = sphi %s285, %s285
        $region173: #{_gather_rows.1} parent=169 // loop_header_branch
          %291 = sbr.rel (%p289) target = $region177
        $region174: #{_gather_rows.1} parent=169 // loop_body
          %v295 = vld [vmem:[%s293] sm:%s286]
          %296 = vst [vmem:[%s294] sm:%s286] %v295
        $region175: #{_gather_rows.1} parent=169 // loop_footer
          %s292 = sadd.s32 1, %s288
        $region176: #{_gather_rows.1} parent=169 // loop_footer_branch
          %287 = sbr.rel target = $region172
        $region177: #{_gather_rows.1} parent=169 // loop_exit
          _
      $region170: #{_gather_rows.1} parent=154 // pred_fallthru
        _
    $region155: #{_gather_rows.1} parent=1 // pred_fallthru
      _
    // Predicated region
    $region156: #{_gather_rows.1} parent=1 // pred_check
      %p262 = pneg %p258
    $region157: #{_gather_rows.1} parent=1 // pred_check_branch
      %264 = sbr.rel (%p262) target = $region159
    $region158: #{_gather_rows.1} parent=1 // pred_region
      %s265 = sshllo.u32 0, 1
      loop: start=0, step=1, limit=1
      $region160: #{_gather_rows.1} parent=158 // loop_pre_header
        _
      $region161: #{_gather_rows.1} parent=158 // loop_header
        %s267 = sphi 0, %s271
        %p268 = scmp.ge.s32.totalorder %s267, 1
        %s272 = sphi %s255, %s255
        %s273 = sphi %s256, %s256
      $region162: #{_gather_rows.1} parent=158 // loop_header_branch
        %270 = sbr.rel (%p268) target = $region166
      $region163: #{_gather_rows.1} parent=158 // loop_body
        %v274 = vld [vmem:[%s272] sm:%s265]
        %275 = vst [vmem:[%s273] sm:%s265] %v274
      $region164: #{_gather_rows.1} parent=158 // loop_footer
        %s271 = sadd.s32 1, %s267
      $region165: #{_gather_rows.1} parent=158 // loop_footer_branch
        %266 = sbr.rel target = $region161
      $region166: #{_gather_rows.1} parent=158 // loop_exit
        _
    $region159: #{_gather_rows.1} parent=1 // pred_fallthru
      _
    // Predicated region
    $region178: #{_gather_rows.1} parent=1 // pred_check
      _
    $region179: #{_gather_rows.1} parent=1 // pred_check_branch
      %299 = sbr.rel (0) target = $region181
    $region180: #{_gather_rows.1} parent=1 // pred_region
      %300 = vsyncadd [#allocation2], 16
    $region181: #{_gather_rows.1} parent=1 // pred_fallthru
      _
    %s301 = sadd.s32 %s14, 6
    %s302 = sld [smem:[#allocation4 + %s301]]
    %s303 = scalar_lea.vmem %s1, %s302
    %s304 = scalar_lea.vmem [#allocation5], 6
    %p306 = scmp.lt.u32.totalorder 1, 8
    %p307 = pneg %p306
    // Predicated region
    $region182: #{_gather_rows.1} parent=1 // pred_check
      _
    $region183: #{_gather_rows.1} parent=1 // pred_check_branch
      %309 = sbr.rel (%p306) target = $region185
    $region184: #{_gather_rows.1} parent=1 // pred_region
      %s324 = sand.u32 1, 7
      %p325 = scmp.eq.s32.totalorder %s324, 0
      %p326 = pneg %p325
      // Predicated region
      $region197: #{_gather_rows.1} parent=184 // pred_check
        _
      $region198: #{_gather_rows.1} parent=184 // pred_check_branch
        %328 = sbr.rel (%p325) target = $region200
      $region199: #{_gather_rows.1} parent=184 // pred_region
        %s329 = sand.u32 1, 7
        %s330 = ssub.s32 1, %s329
        %s331 = scalar_lea.vmem %s303, %s330
        %s332 = ssub.s32 1, %s329
        %s333 = scalar_lea.vmem %s304, %s332 [#allocation5]
        %s334 = sshllo.u32 0, %s329
        loop: start=0, step=1, limit=1
        $region201: #{_gather_rows.1} parent=199 // loop_pre_header
          _
        $region202: #{_gather_rows.1} parent=199 // loop_header
          %s336 = sphi 0, %s340
          %p337 = scmp.ge.s32.totalorder %s336, 1
          %s341 = sphi %s331, %s331
          %s342 = sphi %s333, %s333
        $region203: #{_gather_rows.1} parent=199 // loop_header_branch
          %339 = sbr.rel (%p337) target = $region207
        $region204: #{_gather_rows.1} parent=199 // loop_body
          %v343 = vld [vmem:[%s341] sm:%s334]
          %344 = vst [vmem:[%s342] sm:%s334] %v343
        $region205: #{_gather_rows.1} parent=199 // loop_footer
          %s340 = sadd.s32 1, %s336
        $region206: #{_gather_rows.1} parent=199 // loop_footer_branch
          %335 = sbr.rel target = $region202
        $region207: #{_gather_rows.1} parent=199 // loop_exit
          _
      $region200: #{_gather_rows.1} parent=184 // pred_fallthru
        _
    $region185: #{_gather_rows.1} parent=1 // pred_fallthru
      _
    // Predicated region
    $region186: #{_gather_rows.1} parent=1 // pred_check
      %p310 = pneg %p306
    $region187: #{_gather_rows.1} parent=1 // pred_check_branch
      %312 = sbr.rel (%p310) target = $region189
    $region188: #{_gather_rows.1} parent=1 // pred_region
      %s313 = sshllo.u32 0, 1
      loop: start=0, step=1, limit=1
      $region190: #{_gather_rows.1} parent=188 // loop_pre_header
        _
      $region191: #{_gather_rows.1} parent=188 // loop_header
        %s315 = sphi 0, %s319
        %p316 = scmp.ge.s32.totalorder %s315, 1
        %s320 = sphi %s303, %s303
        %s321 = sphi %s304, %s304
      $region192: #{_gather_rows.1} parent=188 // loop_header_branch
        %318 = sbr.rel (%p316) target = $region196
      $region193: #{_gather_rows.1} parent=188 // loop_body
        %v322 = vld [vmem:[%s320] sm:%s313]
        %323 = vst [vmem:[%s321] sm:%s313] %v322
      $region194: #{_gather_rows.1} parent=188 // loop_footer
        %s319 = sadd.s32 1, %s315
      $region195: #{_gather_rows.1} parent=188 // loop_footer_branch
        %314 = sbr.rel target = $region191
      $region196: #{_gather_rows.1} parent=188 // loop_exit
        _
    $region189: #{_gather_rows.1} parent=1 // pred_fallthru
      _
    // Predicated region
    $region208: #{_gather_rows.1} parent=1 // pred_check
      _
    $region209: #{_gather_rows.1} parent=1 // pred_check_branch
      %347 = sbr.rel (0) target = $region211
    $region210: #{_gather_rows.1} parent=1 // pred_region
      %348 = vsyncadd [#allocation2], 16
    $region211: #{_gather_rows.1} parent=1 // pred_fallthru
      _
    %s349 = sadd.s32 %s14, 7
    %s350 = sld [smem:[#allocation4 + %s349]]
    %s351 = scalar_lea.vmem %s1, %s350
    %s352 = scalar_lea.vmem [#allocation5], 7
    %p354 = scmp.lt.u32.totalorder 1, 8
    %p355 = pneg %p354
    // Predicated region
    $region212: #{_gather_rows.1} parent=1 // pred_check
      _
    $region213: #{_gather_rows.1} parent=1 // pred_check_branch
      %357 = sbr.rel (%p354) target = $region215
    $region214: #{_gather_rows.1} parent=1 // pred_region
      %s372 = sand.u32 1, 7
      %p373 = scmp.eq.s32.totalorder %s372, 0
      %p374 = pneg %p373
      // Predicated region
      $region227: #{_gather_rows.1} parent=214 // pred_check
        _
      $region228: #{_gather_rows.1} parent=214 // pred_check_branch
        %376 = sbr.rel (%p373) target = $region230
      $region229: #{_gather_rows.1} parent=214 // pred_region
        %s377 = sand.u32 1, 7
        %s378 = ssub.s32 1, %s377
        %s379 = scalar_lea.vmem %s351, %s378
        %s380 = ssub.s32 1, %s377
        %s381 = scalar_lea.vmem %s352, %s380 [#allocation5]
        %s382 = sshllo.u32 0, %s377
        loop: start=0, step=1, limit=1
        $region231: #{_gather_rows.1} parent=229 // loop_pre_header
          _
        $region232: #{_gather_rows.1} parent=229 // loop_header
          %s384 = sphi 0, %s388
          %p385 = scmp.ge.s32.totalorder %s384, 1
          %s389 = sphi %s379, %s379
          %s390 = sphi %s381, %s381
        $region233: #{_gather_rows.1} parent=229 // loop_header_branch
          %387 = sbr.rel (%p385) target = $region237
        $region234: #{_gather_rows.1} parent=229 // loop_body
          %v391 = vld [vmem:[%s389] sm:%s382]
          %392 = vst [vmem:[%s390] sm:%s382] %v391
        $region235: #{_gather_rows.1} parent=229 // loop_footer
          %s388 = sadd.s32 1, %s384
        $region236: #{_gather_rows.1} parent=229 // loop_footer_branch
          %383 = sbr.rel target = $region232
        $region237: #{_gather_rows.1} parent=229 // loop_exit
          _
      $region230: #{_gather_rows.1} parent=214 // pred_fallthru
        _
    $region215: #{_gather_rows.1} parent=1 // pred_fallthru
      _
    // Predicated region
    $region216: #{_gather_rows.1} parent=1 // pred_check
      %p358 = pneg %p354
    $region217: #{_gather_rows.1} parent=1 // pred_check_branch
      %360 = sbr.rel (%p358) target = $region219
    $region218: #{_gather_rows.1} parent=1 // pred_region
      %s361 = sshllo.u32 0, 1
      loop: start=0, step=1, limit=1
      $region220: #{_gather_rows.1} parent=218 // loop_pre_header
        _
      $region221: #{_gather_rows.1} parent=218 // loop_header
        %s363 = sphi 0, %s367
        %p364 = scmp.ge.s32.totalorder %s363, 1
        %s368 = sphi %s351, %s351
        %s369 = sphi %s352, %s352
      $region222: #{_gather_rows.1} parent=218 // loop_header_branch
        %366 = sbr.rel (%p364) target = $region226
      $region223: #{_gather_rows.1} parent=218 // loop_body
        %v370 = vld [vmem:[%s368] sm:%s361]
        %371 = vst [vmem:[%s369] sm:%s361] %v370
      $region224: #{_gather_rows.1} parent=218 // loop_footer
        %s367 = sadd.s32 1, %s363
      $region225: #{_gather_rows.1} parent=218 // loop_footer_branch
        %362 = sbr.rel target = $region221
      $region226: #{_gather_rows.1} parent=218 // loop_exit
        _
    $region219: #{_gather_rows.1} parent=1 // pred_fallthru
      _
    // Predicated region
    $region238: #{_gather_rows.1} parent=1 // pred_check
      _
    $region239: #{_gather_rows.1} parent=1 // pred_check_branch
      %395 = sbr.rel (0) target = $region241
    $region240: #{_gather_rows.1} parent=1 // pred_region
      %396 = vsyncadd [#allocation2], 16
    $region241: #{_gather_rows.1} parent=1 // pred_fallthru
      _
    %398 = dma.done [#allocation2], 16
    %400 = dma.done [#allocation2], 16
    %402 = dma.done [#allocation2], 16
    %404 = dma.done [#allocation2], 16
    %406 = dma.done [#allocation2], 16
    %408 = dma.done [#allocation2], 16
    %410 = dma.done [#allocation2], 16
    %412 = dma.done [#allocation2], 16
    // Predicated region
    $region242: #{_gather_rows.1} parent=1 // pred_check
      _
    $region243: #{_gather_rows.1} parent=1 // pred_check_branch
      %414 = sbr.rel (0) target = $region245
    $region244: #{_gather_rows.1} parent=1 // pred_region
      %s416 = ssub.s32 128, 128
      %417 = vsyncadd [#allocation6], %s416
      %s419 = sshll.u32 [#allocation5], 4
      %s420 = int_to_ptr.vmem [resolvable:$true] %s419
      %422 = dma.vmem_to_hbm [thread:$0]  %s420, 128, %s2, [#allocation6]
    $region245: #{_gather_rows.1} parent=1 // pred_fallthru
      _
    // Predicated region
    $region246: #{_gather_rows.1} parent=1 // pred_check
      _
    $region247: #{_gather_rows.1} parent=1 // pred_check_branch
      %424 = sbr.rel (0) target = $region249
    $region248: #{_gather_rows.1} parent=1 // pred_region
      %425 = dma.done [#allocation6], 128
    $region249: #{_gather_rows.1} parent=1 // pred_fallthru
      _
    %426 = vsyncpa [#allocation6], 1
  %427 = vsyncmov [#allocation2]
  %s428 = vpop.sfrf %427
  %p429 = scmp.eq.s32.totalorder %s428, 0
  %p430 = pneg %p429
  %432 = shalt.err (%p430)

</llo_original>
